<compile_context>
chip_gen: v6e
topology: v6e:2x2x1
jax: 0.10.0
libtpu: 0.0.40
codegen_flags: <defaults>
</compile_context>

<pallas_src>
import functools

import numpy as np
import jax
import jax.numpy as jnp
from jax.experimental import pallas as pl
from jax.experimental.pallas import tpu as pltpu


# ----------------------------------------------------------------------------
# Helpers
# ----------------------------------------------------------------------------
def _round_up(x, m):
    return ((x + m - 1) // m) * m


def _prefer_bf16_elementwise():
    """bf16 bias-add/tanh on v6e/v7x (full-rate bf16 VPU/EUP); f32 on v5e."""
    try:
        kind = jax.devices()[0].device_kind.lower()
    except Exception:
        return False
    return ("v6" in kind) or ("v7" in kind)


def _pick_batch_tile(B, batch_tile):
    """Large tiles amortize per-step overhead; >=2 grid steps feed v7x's 2 TCs."""
    if B <= 8:
        return B                       # single tiny block, equals full dim
    # Aim for at least two batch blocks, rounded up to the sublane multiple.
    return min(batch_tile, _round_up(pl.cdiv(B, 2), 8))


# ----------------------------------------------------------------------------
# Pallas kernel: fused MLPBase towers (actor + critic) on one (TB, 2H) slab
# ----------------------------------------------------------------------------
def fused_mlp_kernel(x_ref, w1_ref, w2_ref, b_ref, h_ref, *, bf16_elementwise):
    # x: (TB, ni) f32 -> bf16 MXU operand; w1: (ni, 2H) bf16; w2: (2H, 2H) bf16
    # b: (2, 2H) f32 -- row 0 = layer-1 bias, row 1 = layer-2 bias
    x = x_ref[...].astype(jnp.bfloat16)
    z1 = jnp.dot(x, w1_ref[...], preferred_element_type=jnp.float32)
    if bf16_elementwise:
        # v6e/v7x: bf16 bias add + tanh (EUP/VPU run bf16 at full rate) and the
        # result feeds the second matmul without a separate f32->bf16 cast pass.
        h1 = jnp.tanh(z1.astype(jnp.bfloat16) + b_ref[0:1, :].astype(jnp.bfloat16))
    else:
        # v5e: no bf16 VPU/EUP -> keep f32 elementwise, cast only for the MXU.
        h1 = jnp.tanh(z1 + b_ref[0:1, :]).astype(jnp.bfloat16)
    z2 = jnp.dot(h1, w2_ref[...], preferred_element_type=jnp.float32)
    if bf16_elementwise:
        h2 = jnp.tanh(z2.astype(jnp.bfloat16) + b_ref[1:2, :].astype(jnp.bfloat16))
    else:
        h2 = jnp.tanh(z2 + b_ref[1:2, :])
    # Lane-dense (TB, 2H) bf16 store: [actor_feats | critic_feats].
    h_ref[...] = h2.astype(h_ref.dtype)


def mlp_base_forward(x, params, *, batch_tile=4096, bf16_elementwise=None):
    """Pallas-backed MLPBase.forward (non-recurrent).

    Returns (value [B,1] f32, actor_features [B,H] bf16).
    """
    if bf16_elementwise is None:
        bf16_elementwise = _prefer_bf16_elementwise()

    B, ni = x.shape
    w1, w2, b = params["w1"], params["w2"], params["b"]
    two_h = w1.shape[1]
    H = two_h // 2

    TB = _pick_batch_tile(B, batch_tile)
    grid = (pl.cdiv(B, TB),)

    flops = 2 * B * two_h * (ni + two_h)            # two fused matmuls
    transcendentals = 2 * B * two_h                 # tanh on both layers
    bytes_accessed = int(
        B * ni * 4                                  # x (f32)
        + (ni * two_h + two_h * two_h) * 2          # bf16 weights (resident)
        + 2 * two_h * 4                             # biases
        + B * two_h * 2)                            # bf16 output slab

    kernel = functools.partial(fused_mlp_kernel,
                               bf16_elementwise=bf16_elementwise)

    slab = pl.pallas_call(
        kernel,
        out_shape=jax.ShapeDtypeStruct((B, two_h), jnp.bfloat16),
        grid_spec=pltpu.PrefetchScalarGridSpec(
            num_scalar_prefetch=0,
            grid=grid,
            in_specs=[
                pl.BlockSpec((TB, ni), lambda i: (i, 0)),        # batch-blocked
                pl.BlockSpec((ni, two_h), lambda i: (0, 0)),     # resident
                pl.BlockSpec((two_h, two_h), lambda i: (0, 0)),  # resident
                pl.BlockSpec((2, two_h), lambda i: (0, 0)),      # resident
            ],
            out_specs=pl.BlockSpec((TB, two_h), lambda i: (i, 0)),
        ),
        compiler_params=pltpu.CompilerParams(
            dimension_semantics=("parallel",)),
        cost_estimate=pl.CostEstimate(flops=flops,
                                      transcendentals=transcendentals,
                                      bytes_accessed=bytes_accessed),
    )(x, w1, w2, b)

    actor_features = slab[:, :H]
    critic_features = slab[:, H:]
    # Value head stays outside the kernel: a (B,1) kernel output would force
    # masked partial stores; this matmul is tiny and runs fine as plain XLA.
    value = critic_features.astype(jnp.float32) @ params["wv"] + params["bv"]
    return value, actor_features


def mlp_base_forward_ref(x, params, *, bf16_elementwise):
    """Pure-JAX reference of the same fused math (for the self-check)."""
    xb = x.astype(jnp.bfloat16)
    z1 = jnp.dot(xb, params["w1"], preferred_element_type=jnp.float32)
    if bf16_elementwise:
        h1 = jnp.tanh(z1.astype(jnp.bfloat16)
                      + params["b"][0:1, :].astype(jnp.bfloat16))
    else:
        h1 = jnp.tanh(z1 + params["b"][0:1, :]).astype(jnp.bfloat16)
    z2 = jnp.dot(h1, params["w2"], preferred_element_type=jnp.float32)
    if bf16_elementwise:
        h2 = jnp.tanh(z2.astype(jnp.bfloat16)
                      + params["b"][1:2, :].astype(jnp.bfloat16))
    else:
        h2 = jnp.tanh(z2 + params["b"][1:2, :])
    h2 = h2.astype(jnp.bfloat16)
    H = params["w1"].shape[1] // 2
    ha = h2[:, :H]
    hc = h2[:, H:]
    v = hc.astype(jnp.float32) @ params["wv"] + params["bv"]
    return v, ha


# ----------------------------------------------------------------------------
# Deterministic parameter init (mimics nn.init.orthogonal_ + zero bias)
# ----------------------------------------------------------------------------
def _orthogonal(key, out_dim, in_dim, gain=1.0):
    rows, cols = out_dim, in_dim
    flat = jax.random.normal(key, (max(rows, cols), min(rows, cols)),
                             dtype=jnp.float32)
    q, r = jnp.linalg.qr(flat)
    d = jnp.diagonal(r)
    sign = jnp.where(d == 0, 1.0, jnp.sign(d))   # avoid zeroing a column
    q = q * sign
    if rows < cols:
        q = q.T
    return gain * q[:rows, :cols]


def make_mlp_base_params(num_inputs, hidden_size, key):
    keys = jax.random.split(key, 5)
    g = float(np.sqrt(2.0))
    # Pre-transposed to [in, out].
    wa1 = _orthogonal(keys[0], hidden_size, num_inputs, g).T    # (ni, H) actor L1
    wc1 = _orthogonal(keys[1], hidden_size, num_inputs, g).T    # (ni, H) critic L1
    wa2 = _orthogonal(keys[2], hidden_size, hidden_size, g).T   # (H, H)  actor L2
    wc2 = _orthogonal(keys[3], hidden_size, hidden_size, g).T   # (H, H)  critic L2
    wv = _orthogonal(keys[4], 1, hidden_size, 1.0).T            # (H, 1)  value head

    two_h = 2 * hidden_size
    # Fused layer 1: output columns [0:H] = actor, [H:2H] = critic.
    w1 = jnp.concatenate([wa1, wc1], axis=1).astype(jnp.bfloat16)
    # Fused layer 2: block-diagonal [[wa2, 0], [0, wc2]] -- one lane-dense
    # 128x128 matmul; the zero-MAC halves are free (MXU is not the bottleneck).
    w2 = jnp.zeros((two_h, two_h), jnp.float32)
    w2 = w2.at[:hidden_size, :hidden_size].set(wa2)
    w2 = w2.at[hidden_size:, hidden_size:].set(wc2)
    w2 = w2.astype(jnp.bfloat16)
    # Both layer biases packed into one (2, 2H) tile (zero per torch init).
    b = jnp.zeros((2, two_h), jnp.float32)
    return {
        "w1": w1, "w2": w2, "b": b,
        "wv": wv.astype(jnp.float32),
        "bv": jnp.zeros((1, 1), jnp.float32),
    }


# ----------------------------------------------------------------------------
# RandomPolicy glue (trivial overrides reproduced in plain Python/JAX)
# ----------------------------------------------------------------------------
class RandomPolicyPallas:
    def __init__(self, obs_shape, n_actions, hidden_size=64, key=None):
        assert len(obs_shape) == 1, "small MLPBase config used here"
        self.n_actions = n_actions
        self.hidden_size = hidden_size
        if key is None:
            key = jax.random.PRNGKey(0)
        self.params = make_mlp_base_params(obs_shape[0], hidden_size, key)
        self._np_rng = np.random.RandomState(0)

    @property
    def is_recurrent(self):
        return None  # RandomPolicy.is_recurrent is `pass`

    @property
    def recurrent_hidden_state_size(self):
        return jnp.asarray(10)

    def base_forward(self, inputs, rnn_hxs, masks):
        # The Pallas hot path: MLPBase forward constructed by Policy.__init__.
        value, actor_features = mlp_base_forward(inputs, self.params)
        return value, actor_features, rnn_hxs

    def forward(self, inputs, rnn_hxs, masks):
        return None  # RandomPolicy.forward is `pass`

    def act(self, inputs, rnn_hxs, masks, deterministic=False):
        # TODO(synk): np.random.choice is host-side RNG; no Pallas equivalent needed.
        return (jnp.asarray([10]),
                jnp.asarray([[self._np_rng.choice(self.n_actions)]]),
                jnp.asarray([1]),
                jnp.asarray([list(range(10))]))

    def get_value(self, inputs, rnn_hxs, masks):
        return jnp.asarray(-1)

    def evaluate_actions(self, inputs, rnn_hxs, masks, action):
        return None


# ----------------------------------------------------------------------------
if __name__ == "__main__":
    key = jax.random.PRNGKey(0)
    k_x, k_p = jax.random.split(key)

    B, num_inputs, hidden = 16, 16, 64
    inputs = jax.random.normal(k_x, (B, num_inputs), dtype=jnp.float32)
    rnn_hxs = jnp.zeros((B, 1), jnp.float32)   # non-recurrent base -> size 1
    masks = jnp.ones((B, 1), jnp.float32)

    policy = RandomPolicyPallas((num_inputs,), n_actions=6,
                                hidden_size=hidden, key=k_p)

    # Run the Pallas kernel (the base network forward) once.
    value, actor_features, rnn_hxs_out = policy.base_forward(inputs, rnn_hxs, masks)
    jax.block_until_ready((value, actor_features, rnn_hxs_out))

    # Sanity check against a pure-JAX reference of the same fused math
    # (bf16 MXU operands, f32 accumulate, bf16 output slab).
    bf16_ew = _prefer_bf16_elementwise()
    v_ref, ha_ref = mlp_base_forward_ref(inputs, policy.params,
                                         bf16_elementwise=bf16_ew)

    assert value.shape == (B, 1) and actor_features.shape == (B, hidden)
    assert actor_features.dtype == jnp.bfloat16
    # bf16 output slab -> loosened tolerances (|tanh| <= 1).
    np.testing.assert_allclose(np.asarray(value, dtype=np.float32),
                               np.asarray(v_ref, dtype=np.float32),
                               rtol=2e-2, atol=2e-2)
    np.testing.assert_allclose(np.asarray(actor_features, dtype=np.float32),
                               np.asarray(ha_ref, dtype=np.float32),
                               rtol=2e-2, atol=2e-2)

    # RandomPolicy's own trivial overrides (no tensor math).
    _ = policy.act(inputs, rnn_hxs, masks)
    _ = policy.get_value(inputs, rnn_hxs, masks)
    assert policy.forward(inputs, rnn_hxs, masks) is None

    print("KERNEL_OK")
</pallas_src>

<mosaic_0001>
module attributes {stable_mosaic.version = 11 : i64} {
  func.func @fused_mlp_kernel(%arg0: i32, %arg1: memref<8x16xf32, #tpu.memory_space<vmem>>, %arg2: memref<16x128xbf16, #tpu.memory_space<vmem>>, %arg3: memref<128x128xbf16, #tpu.memory_space<vmem>>, %arg4: memref<2x128xf32, #tpu.memory_space<vmem>>, %arg5: memref<8x128xbf16, #tpu.memory_space<vmem>>) attributes {dimension_semantics = [#tpu.dimension_semantics<parallel>], iteration_bounds = array<i64: 2>, scalar_prefetch = 0 : i64, scratch_operands = 0 : i64, tpu.core_type = #tpu.core_type<tc>, window_params = [{transform_indices = @transform_0, window_bounds = array<i64: 8, 16>}, {pipeline_mode = #tpu.pipeline_mode<synchronous>, transform_indices = @transform_1, window_bounds = array<i64: 16, 128>}, {pipeline_mode = #tpu.pipeline_mode<synchronous>, transform_indices = @transform_2, window_bounds = array<i64: 128, 128>}, {pipeline_mode = #tpu.pipeline_mode<synchronous>, transform_indices = @transform_3, window_bounds = array<i64: 2, 128>}, {transform_indices = @transform_4, window_bounds = array<i64: 8, 128>}]} {
    %c0 = arith.constant 0 : index
    %c0_0 = arith.constant 0 : index
    %0 = vector.load %arg1[%c0, %c0_0] : memref<8x16xf32, #tpu.memory_space<vmem>>, vector<8x16xf32>
    %1 = arith.truncf %0 : vector<8x16xf32> to vector<8x16xbf16>
    %c0_1 = arith.constant 0 : index
    %c0_2 = arith.constant 0 : index
    %2 = vector.load %arg2[%c0_1, %c0_2] : memref<16x128xbf16, #tpu.memory_space<vmem>>, vector<16x128xbf16>
    %cst = arith.constant dense<0.000000e+00> : vector<8x128xf32>
    %3 = tpu.matmul %1, %2, %cst {dimension_numbers = #tpu.dot_dimension_numbers<[1], [0], [0], [1], [0, 0, 1, 1], [], []>} : vector<8x16xbf16>, vector<16x128xbf16>, vector<8x128xf32> -> vector<8x128xf32>
    %c0_3 = arith.constant 0 : index
    %c0_4 = arith.constant 0 : index
    %4 = vector.load %arg4[%c0_3, %c0_4] : memref<2x128xf32, #tpu.memory_space<vmem>>, vector<1x128xf32>
    %5 = vector.broadcast %4 : vector<1x128xf32> to vector<8x128xf32>
    %6 = arith.addf %3, %5 : vector<8x128xf32>
    %7 = math.tanh %6 : vector<8x128xf32>
    %8 = arith.truncf %7 : vector<8x128xf32> to vector<8x128xbf16>
    %c0_5 = arith.constant 0 : index
    %c0_6 = arith.constant 0 : index
    %9 = vector.load %arg3[%c0_5, %c0_6] : memref<128x128xbf16, #tpu.memory_space<vmem>>, vector<128x128xbf16>
    %cst_7 = arith.constant dense<0.000000e+00> : vector<8x128xf32>
    %10 = tpu.matmul %8, %9, %cst_7 {dimension_numbers = #tpu.dot_dimension_numbers<[1], [0], [0], [1], [0, 0, 1, 1], [], []>} : vector<8x128xbf16>, vector<128x128xbf16>, vector<8x128xf32> -> vector<8x128xf32>
    %c1 = arith.constant 1 : index
    %c0_8 = arith.constant 0 : index
    %11 = vector.load %arg4[%c1, %c0_8] : memref<2x128xf32, #tpu.memory_space<vmem>>, vector<1x128xf32>
    %12 = vector.broadcast %11 : vector<1x128xf32> to vector<8x128xf32>
    %13 = arith.addf %10, %12 : vector<8x128xf32>
    %14 = math.tanh %13 : vector<8x128xf32>
    %15 = arith.truncf %14 : vector<8x128xf32> to vector<8x128xbf16>
    %c0_9 = arith.constant 0 : index
    %c0_10 = arith.constant 0 : index
    %16 = vector.load %arg5[%c0_9, %c0_10] : memref<8x128xbf16, #tpu.memory_space<vmem>>, vector<8x128xbf16>
    tpu.vector_store %arg5[%c0_9, %c0_10], %15 {strides = array<i32>} : memref<8x128xbf16, #tpu.memory_space<vmem>>, vector<8x128xbf16>,
    return
  }
  func.func @transform_0(%arg0: i32) -> (i32, i32) {
    %c0_i32 = arith.constant 0 : i32
    %c0_i32_0 = arith.constant 0 : i32
    return %arg0, %c0_i32 : i32, i32
  }
  func.func @transform_1(%arg0: i32) -> (i32, i32) {
    %c0_i32 = arith.constant 0 : i32
    %c0_i32_0 = arith.constant 0 : i32
    %c0_i32_1 = arith.constant 0 : i32
    return %c0_i32, %c0_i32_0 : i32, i32
  }
  func.func @transform_2(%arg0: i32) -> (i32, i32) {
    %c0_i32 = arith.constant 0 : i32
    %c0_i32_0 = arith.constant 0 : i32
    %c0_i32_1 = arith.constant 0 : i32
    return %c0_i32, %c0_i32_0 : i32, i32
  }
  func.func @transform_3(%arg0: i32) -> (i32, i32) {
    %c0_i32 = arith.constant 0 : i32
    %c0_i32_0 = arith.constant 0 : i32
    %c0_i32_1 = arith.constant 0 : i32
    return %c0_i32, %c0_i32_0 : i32, i32
  }
  func.func @transform_4(%arg0: i32) -> (i32, i32) {
    %c0_i32 = arith.constant 0 : i32
    %c0_i32_0 = arith.constant 0 : i32
    return %arg0, %c0_i32 : i32, i32
  }
}

</mosaic_0001>

<llo_original>
// kernel: tpu_custom_call.1
$region0: #{tpu_custom_call.1}
  #allocation0 [shape = 'u32[]', space=smem, size = 0x4, offset = 0x4, fixed_abs, tag = 'smem constant byte address 0x4 - core index']
  #allocation1 [shape = 'u32[144,128]{1,0:T(1,128)}', space=vmem, size = 0x12000, scoped, tag = 'internal scratch']
  %s0 = inlined_call_operand.hbm [shape: f32[16,16], index: 0, kind: input, shape index: {}]
  %s1 = inlined_call_operand.hbm [shape: bf16[16,128], index: 1, kind: input, shape index: {}]
  %s2 = inlined_call_operand.hbm [shape: bf16[128,128], index: 2, kind: input, shape index: {}]
  %s3 = inlined_call_operand.vmem [shape: f32[2,128], index: 3, kind: input, shape index: {}]
  %s4 = inlined_call_operand.hbm [shape: bf16[16,128], index: 4, kind: output, shape index: {}]
  %s5 = sld [smem:[#allocation0]]
  $region61: #{tpu_custom_call.1} parent=0
    _
  %s7 = ssub.s32 1, %s5
  %s8 = scalar_select 0, %s7, %s5
  $region1: #{tpu_custom_call.1} parent=0
    #allocation2 [shape = 'u8[8192]{0}', space=vmem, size = 0x2000, scoped, tag = 'input window, operand 0']
    #allocation3 [shape = 's32[2]{0}', space=sflag, size = 0x8, scoped, tag = 'scoped memory for tpu_custom_call.1']
    #allocation4 [shape = 's32[2]{0}', space=sflag, size = 0x8, scoped, tag = 'scoped memory for tpu_custom_call.1']
    #allocation5 [shape = 'u8[4096]{0}', space=vmem, size = 0x1000, scoped, tag = 'input window, operand 1, single buffered']
    #allocation6 [shape = 's32[1]{0}', space=sflag, size = 0x4, scoped, tag = 'scoped memory for tpu_custom_call.1']
    #allocation7 [shape = 'u8[32768]{0}', space=vmem, size = 0x8000, scoped, tag = 'input window, operand 2, single buffered']
    #allocation8 [shape = 'u8[4096]{0}', space=vmem, size = 0x1000, scoped, tag = 'output window, operand 0']
    %9 = vsyncpa [#allocation3], 0
    %s10 = scalar_lea.sflag [#allocation3], 1
    %11 = vsyncpa %s10, 0
    %12 = vsyncpa [#allocation6], 0
    %13 = vsyncpa [#allocation4], 0
    %s14 = scalar_lea.sflag [#allocation4], 1
    %15 = vsyncpa %s14, 0
    loop: start=0, step=1, limit=4
    $region2: #{tpu_custom_call.1} parent=1 // loop_pre_header
      _
    $region3: #{tpu_custom_call.1} parent=1 // loop_header
      %s17 = sphi 0, %s21
      %p18 = scmp.ge.s32.totalorder %s17, 4
      %s27 = sphi 0, %s29
      %s30 = sphi 0, %s27
      %s31 = sphi 0, %s30
      %s47 = sphi 0, %s31
      %s51 = sphi 0, %s51
      %s53 = sphi 0, %s51
      %s54 = sphi 0, %s53
      %s68 = sphi 0, %s54
      %s72 = sphi 0, %s72
      %s74 = sphi 0, %s72
      %s75 = sphi 0, %s74
      %s89 = sphi 0, %s75
      %s93 = sphi 0, %s93
      %s95 = sphi 0, %s93
      %s96 = sphi 0, %s95
      %s110 = sphi 0, %s96
      %s116 = sphi 0, %s118
      %s119 = sphi 0, %s116
      %s120 = sphi 0, %s119
      %s136 = sphi 0, %s120
    $region4: #{tpu_custom_call.1} parent=1 // loop_header_branch
      %20 = sbr.rel (%p18) target = $region8
    $region5: #{tpu_custom_call.1} parent=1 // loop_body
      %s22 = ssub.s32 %s17, 1
      %s23 = ssub.s32 %s17, 2
      %s24 = sadd.s32 %s17, 1
      %s25 = ssub.s32 %s17, %s24
      %p26 = scmp.eq.s32.totalorder %s25, 0
      %s28 = sadd.s32 %s27, 1
      %s29 = scalar_select %p26, %s27, %s28
      %p32 = pneg %p26
      %p33 = scmp.eq.s32.totalorder %s17, 1
      %p34 = por %p32, %p33
      %p35 = scmp.ne.s32.totalorder %s27, %s30
      %p36 = scmp.eq.s32.totalorder %s17, 0
      %p37 = por %p35, %p36
      %p38 = scmp.ne.s32.totalorder %s27, %s30
      %p39 = scmp.eq.s32.totalorder %s22, 1
      %p40 = por %p38, %p39
      %p41 = scmp.ne.s32.totalorder %s30, %s31
      %p42 = scmp.eq.s32.totalorder %s22, 0
      %p43 = por %p41, %p42
      %p44 = scmp.ne.s32.totalorder %s30, %s31
      %p45 = scmp.eq.s32.totalorder %s23, 1
      %p46 = por %p44, %p45
      %p48 = scmp.ne.s32.totalorder %s31, %s47
      %p49 = scmp.eq.s32.totalorder %s23, 0
      %p50 = por %p48, %p49
      %s52 = sadd.s32 %s51, 1
      %p55 = scmp.eq.s32.totalorder %s17, 1
      %p56 = scmp.ne.s32.totalorder %s51, %s53
      %p57 = scmp.eq.s32.totalorder %s17, 0
      %p58 = por %p56, %p57
      %p59 = scmp.ne.s32.totalorder %s51, %s53
      %p60 = scmp.eq.s32.totalorder %s22, 1
      %p61 = por %p59, %p60
      %p62 = scmp.ne.s32.totalorder %s53, %s54
      %p63 = scmp.eq.s32.totalorder %s22, 0
      %p64 = por %p62, %p63
      %p65 = scmp.ne.s32.totalorder %s53, %s54
      %p66 = scmp.eq.s32.totalorder %s23, 1
      %p67 = por %p65, %p66
      %p69 = scmp.ne.s32.totalorder %s54, %s68
      %p70 = scmp.eq.s32.totalorder %s23, 0
      %p71 = por %p69, %p70
      %s73 = sadd.s32 %s72, 1
      %p76 = scmp.eq.s32.totalorder %s17, 1
      %p77 = scmp.ne.s32.totalorder %s72, %s74
      %p78 = scmp.eq.s32.totalorder %s17, 0
      %p79 = por %p77, %p78
      %p80 = scmp.ne.s32.totalorder %s72, %s74
      %p81 = scmp.eq.s32.totalorder %s22, 1
      %p82 = por %p80, %p81
      %p83 = scmp.ne.s32.totalorder %s74, %s75
      %p84 = scmp.eq.s32.totalorder %s22, 0
      %p85 = por %p83, %p84
      %p86 = scmp.ne.s32.totalorder %s74, %s75
      %p87 = scmp.eq.s32.totalorder %s23, 1
      %p88 = por %p86, %p87
      %p90 = scmp.ne.s32.totalorder %s75, %s89
      %p91 = scmp.eq.s32.totalorder %s23, 0
      %p92 = por %p90, %p91
      %s94 = sadd.s32 %s93, 1
      %p97 = scmp.eq.s32.totalorder %s17, 1
      %p98 = scmp.ne.s32.totalorder %s93, %s95
      %p99 = scmp.eq.s32.totalorder %s17, 0
      %p100 = por %p98, %p99
      %p101 = scmp.ne.s32.totalorder %s93, %s95
      %p102 = scmp.eq.s32.totalorder %s22, 1
      %p103 = por %p101, %p102
      %p104 = scmp.ne.s32.totalorder %s95, %s96
      %p105 = scmp.eq.s32.totalorder %s22, 0
      %p106 = por %p104, %p105
      %p107 = scmp.ne.s32.totalorder %s95, %s96
      %p108 = scmp.eq.s32.totalorder %s23, 1
      %p109 = por %p107, %p108
      %p111 = scmp.ne.s32.totalorder %s96, %s110
      %p112 = scmp.eq.s32.totalorder %s23, 0
      %p113 = por %p111, %p112
      %s114 = ssub.s32 %s17, %s24
      %p115 = scmp.eq.s32.totalorder %s114, 0
      %s117 = sadd.s32 %s116, 1
      %s118 = scalar_select %p115, %s116, %s117
      %p121 = pneg %p115
      %p122 = scmp.eq.s32.totalorder %s17, 1
      %p123 = por %p121, %p122
      %p124 = scmp.ne.s32.totalorder %s116, %s119
      %p125 = scmp.eq.s32.totalorder %s17, 0
      %p126 = por %p124, %p125
      %p127 = scmp.ne.s32.totalorder %s116, %s119
      %p128 = scmp.eq.s32.totalorder %s22, 1
      %p129 = por %p127, %p128
      %p130 = scmp.ne.s32.totalorder %s119, %s120
      %p131 = scmp.eq.s32.totalorder %s22, 0
      %p132 = por %p130, %p131
      %p133 = scmp.ne.s32.totalorder %s119, %s120
      %p134 = scmp.eq.s32.totalorder %s23, 1
      %p135 = por %p133, %p134
      %p137 = scmp.ne.s32.totalorder %s120, %s136
      %p138 = scmp.eq.s32.totalorder %s23, 0
      %p139 = por %p137, %p138
      %p140 = scmp.le.s32.totalorder 1, %s17
      %p141 = scmp.lt.s32.totalorder %s17, 3
      %p142 = pnand %p140, %p141
      %p143 = pneg %p142
      // Predicated region
      $region9: #{tpu_custom_call.1} parent=5 // pred_check
        _
      $region10: #{tpu_custom_call.1} parent=5 // pred_check_branch
        %145 = sbr.rel (%p142) target = $region12
      $region11: #{tpu_custom_call.1} parent=5 // pred_region
        %s146 = ssub.s32 %s17, 1
        // Predicated region
        $region13: #{tpu_custom_call.1} parent=11 // pred_check
          %p147 = pneg %p64
        $region14: #{tpu_custom_call.1} parent=11 // pred_check_branch
          %149 = sbr.rel (%p147) target = $region16
        $region15: #{tpu_custom_call.1} parent=11 // pred_region
          %s151 = ssub.s32 128, 128
          %152 = vsyncadd [#allocation6], %s151
          %s153 = sshll.u32 [#allocation5], 4
          %s154 = int_to_ptr.vmem [resolvable:$true] %s153
          %159 = dma.hbm_to_vmem [thread:$0]  %s1, 128, %s154, [#allocation6], 64, 64, 4
        $region16: #{tpu_custom_call.1} parent=11 // pred_fallthru
          _
        // Predicated region
        $region17: #{tpu_custom_call.1} parent=11 // pred_check
          %p160 = pneg %p85
        $region18: #{tpu_custom_call.1} parent=11 // pred_check_branch
          %162 = sbr.rel (%p160) target = $region20
        $region19: #{tpu_custom_call.1} parent=11 // pred_region
          %s164 = ssub.s32 1024, 1024
          %165 = vsyncadd [#allocation6], %s164
          %s166 = sshll.u32 [#allocation7], 4
          %s167 = int_to_ptr.vmem [resolvable:$true] %s166
          %172 = dma.hbm_to_vmem [thread:$0]  %s2, 1024, %s167, [#allocation6], 64, 64, 4
        $region20: #{tpu_custom_call.1} parent=11 // pred_fallthru
          _
        // Predicated region
        $region21: #{tpu_custom_call.1} parent=11 // pred_check
          %p173 = pneg %p106
        $region22: #{tpu_custom_call.1} parent=11 // pred_check_branch
          %175 = sbr.rel (%p173) target = $region24
        $region23: #{tpu_custom_call.1} parent=11 // pred_region
          _
        $region24: #{tpu_custom_call.1} parent=11 // pred_fallthru
          _
      $region12: #{tpu_custom_call.1} parent=5 // pred_fallthru
        _
      %p176 = scmp.lt.s32.totalorder %s17, 2
      // Predicated region
      $region25: #{tpu_custom_call.1} parent=5 // pred_check
        %p177 = pneg %p176
      $region26: #{tpu_custom_call.1} parent=5 // pred_check_branch
        %179 = sbr.rel (%p177) target = $region28
      $region27: #{tpu_custom_call.1} parent=5 // pred_region
        // Predicated region
        $region29: #{tpu_custom_call.1} parent=27 // pred_check
          %p180 = pneg %p37
        $region30: #{tpu_custom_call.1} parent=27 // pred_check_branch
          %182 = sbr.rel (%p180) target = $region32
        $region31: #{tpu_custom_call.1} parent=27 // pred_region
          %s183 = sand.u32 %s27, 1
          %s184 = scalar_lea.sflag [#allocation3], %s183
          %s185 = sand.u32 %s27, 1
          %s186 = smul.addr %s185, 8
          %s187 = scalar_lea.vmem [#allocation2], %s186
          %s189 = ssub.s32 128, 128
          %190 = vsyncadd %s184, %s189
          %s191 = smul.addr %s17, 128
          %s192 = scalar_lea.hbm %s0, %s191
          %s194 = sshll.u32 %s187, 4
          %s195 = int_to_ptr.vmem [resolvable:$true] %s194
          %197 = dma.hbm_to_vmem [thread:$0]  %s192, 128, %s195, %s184
        $region32: #{tpu_custom_call.1} parent=27 // pred_fallthru
          _
      $region28: #{tpu_custom_call.1} parent=5 // pred_fallthru
        _
      %p198 = scmp.le.s32.totalorder 1, %s17
      %p199 = scmp.lt.s32.totalorder %s17, 3
      %p200 = pnand %p198, %p199
      %p201 = pneg %p200
      // Predicated region
      $region33: #{tpu_custom_call.1} parent=5 // pred_check
        _
      $region34: #{tpu_custom_call.1} parent=5 // pred_check_branch
        %203 = sbr.rel (%p200) target = $region36
      $region35: #{tpu_custom_call.1} parent=5 // pred_region
        %s204 = ssub.s32 %s17, 1
        %s205 = sand.u32 %s30, 1
        %s206 = scalar_lea.sflag [#allocation3], %s205
        %s207 = sand.u32 %s30, 1
        %s208 = smul.addr %s207, 8
        %s209 = scalar_lea.vmem [#allocation2], %s208
        // Predicated region
        $region37: #{tpu_custom_call.1} parent=35 // pred_check
          %p210 = pneg %p43
        $region38: #{tpu_custom_call.1} parent=35 // pred_check_branch
          %212 = sbr.rel (%p210) target = $region40
        $region39: #{tpu_custom_call.1} parent=35 // pred_region
          %213 = dma.done %s206, 128
        $region40: #{tpu_custom_call.1} parent=35 // pred_fallthru
          _
        // Predicated region
        $region41: #{tpu_custom_call.1} parent=35 // pred_check
          %p214 = pneg %p64
        $region42: #{tpu_custom_call.1} parent=35 // pred_check_branch
          %216 = sbr.rel (%p214) target = $region44
        $region43: #{tpu_custom_call.1} parent=35 // pred_region
          %217 = dma.done [#allocation6], 128
        $region44: #{tpu_custom_call.1} parent=35 // pred_fallthru
          _
        // Predicated region
        $region45: #{tpu_custom_call.1} parent=35 // pred_check
          %p218 = pneg %p85
        $region46: #{tpu_custom_call.1} parent=35 // pred_check_branch
          %220 = sbr.rel (%p218) target = $region48
        $region47: #{tpu_custom_call.1} parent=35 // pred_region
          %221 = dma.done [#allocation6], 1024
        $region48: #{tpu_custom_call.1} parent=35 // pred_fallthru
          _
        %s222 = sand.u32 %s30, 1
        %s223 = scalar_lea.sflag [#allocation3], %s222
        %s224 = sand.u32 %s30, 1
        %s225 = smul.addr %s224, 8
        %s226 = scalar_lea.vmem [#allocation2], %s225
        %p227 = pneg %p43
        %p228 = pneg %p40
        %p229 = pneg %p64
        %p230 = pneg %p61
        %p231 = pneg %p85
        %p232 = pneg %p82
        %p233 = pneg %p106
        %p234 = pneg %p103
        %p235 = pneg %p132
        %p236 = pneg %p129
        %s237 = sand.u32 %s119, 1
        %s238 = scalar_lea.sflag [#allocation4], %s237
        %s239 = sand.u32 %s119, 1
        %s240 = smul.addr %s239, 4
        %s241 = scalar_lea.vmem [#allocation8], %s240
        %v243 = vld [vmem:[%s209] sm:$0xff]
        %v244 = vpack.c.bf16 %v243, %v243
        %v245 = vld [vmem:[#allocation5] sm:$0xf]
        %v246 = vld [vmem:[#allocation5 + $0x4] sm:$0xf]
        %v247 = vld [vmem:[%s3] sm:$0x1]
        %v248 = vlaneseq
        %v249 = vshrl.u32 %v248, 7
        %v250 = vsub.s32 0, %v249
        %v251 = vrot.slane %v247, %v250
        %v254 = vunpack.c.l.b16 %v245
        %v255 = vunpack.c.l.b16 %v246
        %v256 = vpack.c.b16 %v255, %v254
        %vm258 = vcmask 130048
        %v260 = vsel %vm258, %v244, 0
        %262 = vmatprep.subr.bf16.mxu0 0
        %263 = vmatpush1.bf16.msra.mxu0 0
        %264 = vmatprep.subr.bf16.mxu0 0
        %265 = vmatpush1.bf16.msra.mxu0 0
        %266 = vmatprep.subr.bf16.mxu0 0
        %267 = vmatpush1.bf16.msra.mxu0 0
        %268 = vmatprep.subr.bf16.mxu0 0
        %269 = vmatpush1.bf16.msra.mxu0 0
        %270 = vmatprep.subr.bf16.mxu0 0
        %271 = vmatpush1.bf16.msra.mxu0 0
        %272 = vmatprep.subr.bf16.mxu0 0
        %273 = vmatpush1.bf16.msra.mxu0 0
        %274 = vmatprep.subr.bf16.mxu0 0
        %275 = vmatpush1.bf16.msra.mxu0 0
        %276 = vmatprep.subr.bf16.mxu0 0
        %277 = vmatpush1.bf16.msra.mxu0 %v256
        %278 = vmatprep.subr.bf16.mxu0 0
        %279 = vmatpush2.bf16.msra.mxu0 0
        %280 = vmatprep.subr.bf16.mxu0 0
        %281 = vmatpush2.bf16.msra.mxu0 0
        %282 = vmatprep.subr.bf16.mxu0 0
        %283 = vmatpush2.bf16.msra.mxu0 0
        %284 = vmatprep.subr.bf16.mxu0 0
        %285 = vmatpush2.bf16.msra.mxu0 0
        %286 = vmatprep.subr.bf16.mxu0 0
        %287 = vmatpush2.bf16.msra.mxu0 0
        %288 = vmatprep.subr.bf16.mxu0 0
        %289 = vmatpush2.bf16.msra.mxu0 0
        %290 = vmatprep.subr.bf16.mxu0 0
        %291 = vmatpush2.bf16.msra.mxu0 0
        %292 = vmatprep.subr.bf16.mxu0 0
        %293 = vmatpush2.bf16.msra.mxu0 0
        %294 = vmatprep.mubr.bf16.mxu0 0
        %295 = vmatmul.mubr.bf16.gmra.mxu0 %v260
        %v296 = vpop.f32.mrf.mxu0
        %v297 = vadd.f32 %v251, %v296
        %v298 = vpop.f32.mrf.mxu0
        %v299 = vpop.f32.mrf.mxu0
        %v300 = vpop.f32.mrf.mxu0
        %301 = vdwg.mxu0
        %v302 = vtanh.pop %v297
        %v303 = vpack.c.bf16 %v302, %v302
        %v304 = vld [vmem:[#allocation7] sm:$0xf]
        %v305 = vld [vmem:[#allocation7 + $0x4] sm:$0xf]
        %v306 = vld [vmem:[#allocation7 + $0x8] sm:$0xf]
        %v307 = vld [vmem:[#allocation7 + $0xc] sm:$0xf]
        %v308 = vld [vmem:[#allocation7 + $0x10] sm:$0xf]
        %v309 = vld [vmem:[#allocation7 + $0x14] sm:$0xf]
        %v310 = vld [vmem:[#allocation7 + $0x18] sm:$0xf]
        %v311 = vld [vmem:[#allocation7 + $0x1c] sm:$0xf]
        %v312 = vld [vmem:[#allocation7 + $0x20] sm:$0xf]
        %v313 = vld [vmem:[#allocation7 + $0x24] sm:$0xf]
        %v314 = vld [vmem:[#allocation7 + $0x28] sm:$0xf]
        %v315 = vld [vmem:[#allocation7 + $0x2c] sm:$0xf]
        %v316 = vld [vmem:[#allocation7 + $0x30] sm:$0xf]
        %v317 = vld [vmem:[#allocation7 + $0x34] sm:$0xf]
        %v318 = vld [vmem:[#allocation7 + $0x38] sm:$0xf]
        %v319 = vld [vmem:[#allocation7 + $0x3c] sm:$0xf]
        %v320 = vld [vmem:[%s3 + $0x1] sm:$0x1]
        %v321 = vlaneseq
        %v322 = vshrl.u32 %v321, 7
        %v323 = vsub.s32 0, %v322
        %v324 = vrot.slane %v320, %v323
        %v341 = vunpack.c.l.b16 %v304
        %v342 = vunpack.c.l.b16 %v305
        %v343 = vunpack.c.l.b16 %v306
        %v344 = vunpack.c.l.b16 %v307
        %v345 = vunpack.c.l.b16 %v308
        %v346 = vunpack.c.l.b16 %v309
        %v347 = vunpack.c.l.b16 %v310
        %v348 = vunpack.c.l.b16 %v311
        %v349 = vunpack.c.l.b16 %v312
        %v350 = vunpack.c.l.b16 %v313
        %v351 = vunpack.c.l.b16 %v314
        %v352 = vunpack.c.l.b16 %v315
        %v353 = vunpack.c.l.b16 %v316
        %v354 = vunpack.c.l.b16 %v317
        %v355 = vunpack.c.l.b16 %v318
        %v356 = vunpack.c.l.b16 %v319
        %v357 = vpack.c.b16 %v342, %v341
        %v358 = vpack.c.b16 %v344, %v343
        %v359 = vpack.c.b16 %v346, %v345
        %v360 = vpack.c.b16 %v348, %v347
        %v361 = vpack.c.b16 %v350, %v349
        %v362 = vpack.c.b16 %v352, %v351
        %v363 = vpack.c.b16 %v354, %v353
        %v364 = vpack.c.b16 %v356, %v355
        %373 = vmatprep.subr.bf16.mxu0 0
        %374 = vmatpush1.bf16.msra.mxu0 %v364
        %375 = vmatprep.subr.bf16.mxu0 0
        %376 = vmatpush1.bf16.msra.mxu0 %v363
        %377 = vmatprep.subr.bf16.mxu0 0
        %378 = vmatpush1.bf16.msra.mxu0 %v362
        %379 = vmatprep.subr.bf16.mxu0 0
        %380 = vmatpush1.bf16.msra.mxu0 %v361
        %381 = vmatprep.subr.bf16.mxu0 0
        %382 = vmatpush1.bf16.msra.mxu0 %v360
        %383 = vmatprep.subr.bf16.mxu0 0
        %384 = vmatpush1.bf16.msra.mxu0 %v359
        %385 = vmatprep.subr.bf16.mxu0 0
        %386 = vmatpush1.bf16.msra.mxu0 %v358
        %387 = vmatprep.subr.bf16.mxu0 0
        %388 = vmatpush1.bf16.msra.mxu0 %v357
        %389 = vmatprep.subr.bf16.mxu0 0
        %390 = vmatpush2.bf16.msra.mxu0 0
        %391 = vmatprep.subr.bf16.mxu0 0
        %392 = vmatpush2.bf16.msra.mxu0 0
        %393 = vmatprep.subr.bf16.mxu0 0
        %394 = vmatpush2.bf16.msra.mxu0 0
        %395 = vmatprep.subr.bf16.mxu0 0
        %396 = vmatpush2.bf16.msra.mxu0 0
        %397 = vmatprep.subr.bf16.mxu0 0
        %398 = vmatpush2.bf16.msra.mxu0 0
        %399 = vmatprep.subr.bf16.mxu0 0
        %400 = vmatpush2.bf16.msra.mxu0 0
        %401 = vmatprep.subr.bf16.mxu0 0
        %402 = vmatpush2.bf16.msra.mxu0 0
        %403 = vmatprep.subr.bf16.mxu0 0
        %404 = vmatpush2.bf16.msra.mxu0 0
        %405 = vmatprep.mubr.bf16.mxu0 0
        %406 = vmatmul.mubr.bf16.gmra.mxu0 %v303
        %v407 = vpop.f32.mrf.mxu0
        %v408 = vadd.f32 %v324, %v407
        %v409 = vpop.f32.mrf.mxu0
        %v410 = vpop.f32.mrf.mxu0
        %v411 = vpop.f32.mrf.mxu0
        %412 = vdwg.mxu0
        %v413 = vtanh.pop %v408
        %v414 = vpack.c.bf16 %v413, %v413
        %415 = vst [vmem:[%s241] sm:$0xf] %v414
        %s416 = sand.u32 %s119, 1
        %s417 = scalar_lea.sflag [#allocation4], %s416
        %s418 = sand.u32 %s119, 1
        %s419 = smul.addr %s418, 4
        %s420 = scalar_lea.vmem [#allocation8], %s419
        // Predicated region
        $region49: #{tpu_custom_call.1} parent=35 // pred_check
          %p421 = pneg %p129
        $region50: #{tpu_custom_call.1} parent=35 // pred_check_branch
          %423 = sbr.rel (%p421) target = $region52
        $region51: #{tpu_custom_call.1} parent=35 // pred_region
          %s425 = ssub.s32 64, 64
          %426 = vsyncadd %s417, %s425
          %s427 = smul.addr %s22, 64
          %s428 = scalar_lea.hbm %s4, %s427
          %s430 = sshll.u32 %s420, 4
          %s431 = int_to_ptr.vmem [resolvable:$true] %s430
          %433 = dma.vmem_to_hbm [thread:$0]  %s431, 64, %s428, %s417
        $region52: #{tpu_custom_call.1} parent=35 // pred_fallthru
          _
      $region36: #{tpu_custom_call.1} parent=5 // pred_fallthru
        _
      %p434 = scmp.le.s32.totalorder 2, %s17
      // Predicated region
      $region53: #{tpu_custom_call.1} parent=5 // pred_check
        %p435 = pneg %p434
      $region54: #{tpu_custom_call.1} parent=5 // pred_check_branch
        %437 = sbr.rel (%p435) target = $region56
      $region55: #{tpu_custom_call.1} parent=5 // pred_region
        %s438 = ssub.s32 %s17, 2
        // Predicated region
        $region57: #{tpu_custom_call.1} parent=55 // pred_check
          %p439 = pneg %p135
        $region58: #{tpu_custom_call.1} parent=55 // pred_check_branch
          %441 = sbr.rel (%p439) target = $region60
        $region59: #{tpu_custom_call.1} parent=55 // pred_region
          %s442 = sand.u32 %s120, 1
          %s443 = scalar_lea.sflag [#allocation4], %s442
          %s444 = sand.u32 %s120, 1
          %s445 = smul.addr %s444, 4
          %s446 = scalar_lea.vmem [#allocation8], %s445
          %447 = dma.done %s443, 64
        $region60: #{tpu_custom_call.1} parent=55 // pred_fallthru
          _
      $region56: #{tpu_custom_call.1} parent=5 // pred_fallthru
        _
    $region6: #{tpu_custom_call.1} parent=1 // loop_footer
      %s21 = sadd.s32 1, %s17
    $region7: #{tpu_custom_call.1} parent=1 // loop_footer_branch
      %16 = sbr.rel target = $region3
    $region8: #{tpu_custom_call.1} parent=1 // loop_exit
      _
    %448 = vsyncpa [#allocation3], 1
    %s449 = scalar_lea.sflag [#allocation3], 1
    %450 = vsyncpa %s449, 1
    %451 = vsyncpa [#allocation6], 1
    %452 = vsyncpa [#allocation4], 1
    %s453 = scalar_lea.sflag [#allocation4], 1
    %454 = vsyncpa %s453, 1

</llo_original>
